<compile_context>
chip_gen: v5e
topology: v5e:2x2
jax: 0.10.0
libtpu: 0.0.40
codegen_flags: <defaults>
</compile_context>

<pallas_src>
import math

import jax
import jax.numpy as jnp
from jax import lax
from jax.experimental import pallas as pl
from jax.experimental.pallas import tpu as pltpu

_INV_SQRT2 = 1.0 / math.sqrt(2.0)


def _round_up(x, m):
    return -(-x // m) * m


def _ff_kernel(x_ref, w1_ref, b1_ref, w2_ref, b2_ref, o_ref):
    # x_ref: (bm, dim) orig dtype; w1_ref: (dim, inner) bf16; b1_ref: (1, inner) f32
    # w2_ref: (inner, dim_out) bf16; b2_ref: (1, dim_out) f32; o_ref: (bm, dim_out)
    xc = x_ref[...].astype(w1_ref.dtype)
    h = jnp.dot(xc, w1_ref[...], preferred_element_type=jnp.float32)
    h = h + b1_ref[...]
    # Exact (erf-based) GELU in f32, matching torch.nn.GELU() default.
    h = 0.5 * h * (1.0 + lax.erf(h * _INV_SQRT2))
    out = jnp.dot(h.astype(w2_ref.dtype), w2_ref[...],
                  preferred_element_type=jnp.float32)
    out = out + b2_ref[...]
    o_ref[...] = out.astype(o_ref.dtype)


def feedforward_pallas(x, w1, b1, w2, b2, *, block_rows=256,
                       compute_dtype=jnp.bfloat16):
    """x: (batch, seq, dim) -> (batch, seq, dim_out).

    Matmuls run in `compute_dtype` (bf16 default) on the MXU with f32
    accumulation; bias-add and GELU are done in f32; output in x.dtype.
    """
    orig_dtype = x.dtype
    batch, seq, dim = x.shape
    inner = w1.shape[1]
    dim_out = w2.shape[1]
    n = batch * seq

    # Row tile: large multiple of 128 on realistic shapes to fill the MXU and
    # amortize per-grid-step overhead; shrink (and pad) for tiny inputs.
    bm = min(block_rows, _round_up(n, 16))
    n_pad = _round_up(n, bm)

    x2 = x.reshape(n, dim)
    if n_pad != n:
        x2 = jnp.pad(x2, ((0, n_pad - n), (0, 0)))
    w1c = w1.astype(compute_dtype)
    w2c = w2.astype(compute_dtype)
    b1_2 = b1.reshape(1, inner).astype(jnp.float32)
    b2_2 = b2.reshape(1, dim_out).astype(jnp.float32)

    # Explicit VMEM budget: double-buffered x/out tiles, single-buffered
    # weights, f32 intermediate h. Clamp to [32 MiB, 64 MiB] (v7x-safe).
    csize = jnp.dtype(compute_dtype).itemsize
    osize = jnp.dtype(orig_dtype).itemsize
    need = (2 * bm * dim * osize
            + 2 * bm * dim_out * osize
            + (dim * inner + inner * dim_out) * csize
            + (inner + dim_out) * 4
            + bm * inner * 4)
    vmem_limit = int(min(max(need * 3 // 2 + (4 << 20), 32 << 20), 64 << 20))

    grid = (n_pad // bm,)

    def _run(single_buffer_weights):
        # Weights/biases have a constant index_map -> single-buffering halves
        # their VMEM footprint with zero overlap loss.
        wkw = ({"pipeline_mode": pl.Buffered(1)}
               if single_buffer_weights else {})

        def wspec(shape):
            return pl.BlockSpec(shape, lambda i: (0, 0), **wkw)

        return pl.pallas_call(
            _ff_kernel,
            out_shape=jax.ShapeDtypeStruct((n_pad, dim_out), orig_dtype),
            grid_spec=pltpu.PrefetchScalarGridSpec(
                num_scalar_prefetch=0,
                grid=grid,
                in_specs=[
                    pl.BlockSpec((bm, dim), lambda i: (i, 0)),
                    wspec((dim, inner)),
                    wspec((1, inner)),
                    wspec((inner, dim_out)),
                    wspec((1, dim_out)),
                ],
                out_specs=pl.BlockSpec((bm, dim_out), lambda i: (i, 0)),
            ),
            compiler_params=pltpu.CompilerParams(
                dimension_semantics=("parallel",),
                vmem_limit_bytes=vmem_limit),
        )(x2, w1c, b1_2, w2c, b2_2)

    try:
        out = _run(True)
    except Exception:
        # Fallback if this Pallas build rejects single-buffered input specs.
        out = _run(False)

    if n_pad != n:
        out = out[:n]
    return out.reshape(batch, seq, dim_out)


def init_feedforward_params(key, dim, mult=4, dim_out=None, dtype=jnp.float32):
    """nn.Linear default init: U(-1/sqrt(fan_in), 1/sqrt(fan_in))."""
    inner_dim = int(dim * mult)
    dim_out = dim if dim_out is None else dim_out
    k1, k2, k3, k4 = jax.random.split(key, 4)
    lim1 = 1.0 / math.sqrt(dim)
    lim2 = 1.0 / math.sqrt(inner_dim)
    w1 = jax.random.uniform(k1, (dim, inner_dim), dtype, -lim1, lim1)
    b1 = jax.random.uniform(k2, (inner_dim,), dtype, -lim1, lim1)
    w2 = jax.random.uniform(k3, (inner_dim, dim_out), dtype, -lim2, lim2)
    b2 = jax.random.uniform(k4, (dim_out,), dtype, -lim2, lim2)
    return w1, b1, w2, b2


def feedforward_ref(x, w1, b1, w2, b2, compute_dtype=jnp.float32):
    """Reference with the same quantization points as the kernel."""
    xc = x.astype(compute_dtype)
    h = jnp.dot(xc, w1.astype(compute_dtype),
                preferred_element_type=jnp.float32) + b1.astype(jnp.float32)
    h = 0.5 * h * (1.0 + lax.erf(h * _INV_SQRT2))
    out = jnp.dot(h.astype(compute_dtype), w2.astype(compute_dtype),
                  preferred_element_type=jnp.float32) + b2.astype(jnp.float32)
    return out.astype(x.dtype)


if __name__ == "__main__":
    key = jax.random.PRNGKey(0)
    kx, kp = jax.random.split(key)

    batch, seq, dim = 2, 8, 32          # inner_dim = 128, dim_out = 32
    x = jax.random.normal(kx, (batch, seq, dim), jnp.float32)
    w1, b1, w2, b2 = init_feedforward_params(kp, dim, mult=4)
    dim_out = w2.shape[1]

    out = feedforward_pallas(x, w1, b1, w2, b2)
    out = jax.block_until_ready(out)
    assert out.shape == (batch, seq, dim_out), out.shape

    # Compare against a reference with identical bf16 quantization points
    # (tight) and against the full-f32 reference (loose, bf16 rounding).
    ref_q = feedforward_ref(x, w1, b1, w2, b2, compute_dtype=jnp.bfloat16)
    ref_f = feedforward_ref(x, w1, b1, w2, b2, compute_dtype=jnp.float32)
    err_q = float(jnp.max(jnp.abs(out - ref_q)))
    err_f = float(jnp.max(jnp.abs(out - ref_f)))
    assert jnp.allclose(out, ref_q, atol=2e-2, rtol=2e-2), \
        f"max err vs quantized ref {err_q}"
    assert jnp.allclose(out, ref_f, atol=6e-2, rtol=6e-2), \
        f"max err vs f32 ref {err_f}"
    print("KERNEL_OK")
</pallas_src>

<mosaic_0001>
module attributes {stable_mosaic.version = 11 : i64} {
  func.func @_ff_kernel(%arg0: i32, %arg1: memref<16x32xf32, #tpu.memory_space<vmem>>, %arg2: memref<32x128xbf16, #tpu.memory_space<vmem>>, %arg3: memref<1x128xf32, #tpu.memory_space<vmem>>, %arg4: memref<128x32xbf16, #tpu.memory_space<vmem>>, %arg5: memref<1x32xf32, #tpu.memory_space<vmem>>, %arg6: memref<16x32xf32, #tpu.memory_space<vmem>>) attributes {dimension_semantics = [#tpu.dimension_semantics<parallel>], iteration_bounds = array<i64: 1>, scalar_prefetch = 0 : i64, scratch_operands = 0 : i64, tpu.core_type = #tpu.core_type<tc>, window_params = [{transform_indices = @transform_0, window_bounds = array<i64: 16, 32>}, {pipeline_mode = #tpu.pipeline_mode<synchronous>, transform_indices = @transform_1, window_bounds = array<i64: 32, 128>}, {pipeline_mode = #tpu.pipeline_mode<synchronous>, transform_indices = @transform_2, window_bounds = array<i64: 1, 128>}, {pipeline_mode = #tpu.pipeline_mode<synchronous>, transform_indices = @transform_3, window_bounds = array<i64: 128, 32>}, {pipeline_mode = #tpu.pipeline_mode<synchronous>, transform_indices = @transform_4, window_bounds = array<i64: 1, 32>}, {transform_indices = @transform_5, window_bounds = array<i64: 16, 32>}]} {
    %c0 = arith.constant 0 : index
    %c0_0 = arith.constant 0 : index
    %0 = vector.load %arg1[%c0, %c0_0] : memref<16x32xf32, #tpu.memory_space<vmem>>, vector<16x32xf32>
    %1 = arith.truncf %0 : vector<16x32xf32> to vector<16x32xbf16>
    %c0_1 = arith.constant 0 : index
    %c0_2 = arith.constant 0 : index
    %2 = vector.load %arg2[%c0_1, %c0_2] : memref<32x128xbf16, #tpu.memory_space<vmem>>, vector<32x128xbf16>
    %cst = arith.constant dense<0.000000e+00> : vector<16x128xf32>
    %3 = tpu.matmul %1, %2, %cst {dimension_numbers = #tpu.dot_dimension_numbers<[1], [0], [0], [1], [0, 0, 1, 1], [], []>} : vector<16x32xbf16>, vector<32x128xbf16>, vector<16x128xf32> -> vector<16x128xf32>
    %c0_3 = arith.constant 0 : index
    %c0_4 = arith.constant 0 : index
    %4 = vector.load %arg3[%c0_3, %c0_4] : memref<1x128xf32, #tpu.memory_space<vmem>>, vector<1x128xf32>
    %5 = vector.broadcast %4 : vector<1x128xf32> to vector<16x128xf32>
    %6 = arith.addf %3, %5 : vector<16x128xf32>
    %cst_5 = arith.constant 5.000000e-01 : f32
    %7 = vector.broadcast %cst_5 : f32 to vector<16x128xf32>
    %8 = arith.mulf %7, %6 : vector<16x128xf32>
    %cst_6 = arith.constant 0.707106769 : f32
    %9 = vector.broadcast %cst_6 : f32 to vector<16x128xf32>
    %10 = arith.mulf %6, %9 : vector<16x128xf32>
    %11 = math.erf %10 : vector<16x128xf32>
    %cst_7 = arith.constant 1.000000e+00 : f32
    %12 = vector.broadcast %cst_7 : f32 to vector<16x128xf32>
    %13 = arith.addf %12, %11 : vector<16x128xf32>
    %14 = arith.mulf %8, %13 : vector<16x128xf32>
    %15 = arith.truncf %14 : vector<16x128xf32> to vector<16x128xbf16>
    %c0_8 = arith.constant 0 : index
    %c0_9 = arith.constant 0 : index
    %16 = vector.load %arg4[%c0_8, %c0_9] : memref<128x32xbf16, #tpu.memory_space<vmem>>, vector<128x32xbf16>
    %cst_10 = arith.constant dense<0.000000e+00> : vector<16x32xf32>
    %17 = tpu.matmul %15, %16, %cst_10 {dimension_numbers = #tpu.dot_dimension_numbers<[1], [0], [0], [1], [0, 0, 1, 1], [], []>} : vector<16x128xbf16>, vector<128x32xbf16>, vector<16x32xf32> -> vector<16x32xf32>
    %c0_11 = arith.constant 0 : index
    %c0_12 = arith.constant 0 : index
    %18 = vector.load %arg5[%c0_11, %c0_12] : memref<1x32xf32, #tpu.memory_space<vmem>>, vector<1x32xf32>
    %19 = vector.broadcast %18 : vector<1x32xf32> to vector<16x32xf32>
    %20 = arith.addf %17, %19 : vector<16x32xf32>
    %c0_13 = arith.constant 0 : index
    %c0_14 = arith.constant 0 : index
    %21 = vector.load %arg6[%c0_13, %c0_14] : memref<16x32xf32, #tpu.memory_space<vmem>>, vector<16x32xf32>
    tpu.vector_store %arg6[%c0_13, %c0_14], %20 {strides = array<i32>} : memref<16x32xf32, #tpu.memory_space<vmem>>, vector<16x32xf32>,
    return
  }
  func.func @transform_0(%arg0: i32) -> (i32, i32) {
    %c0_i32 = arith.constant 0 : i32
    %c0_i32_0 = arith.constant 0 : i32
    return %arg0, %c0_i32 : i32, i32
  }
  func.func @transform_1(%arg0: i32) -> (i32, i32) {
    %c0_i32 = arith.constant 0 : i32
    %c0_i32_0 = arith.constant 0 : i32
    %c0_i32_1 = arith.constant 0 : i32
    return %c0_i32, %c0_i32_0 : i32, i32
  }
  func.func @transform_2(%arg0: i32) -> (i32, i32) {
    %c0_i32 = arith.constant 0 : i32
    %c0_i32_0 = arith.constant 0 : i32
    %c0_i32_1 = arith.constant 0 : i32
    return %c0_i32, %c0_i32_0 : i32, i32
  }
  func.func @transform_3(%arg0: i32) -> (i32, i32) {
    %c0_i32 = arith.constant 0 : i32
    %c0_i32_0 = arith.constant 0 : i32
    %c0_i32_1 = arith.constant 0 : i32
    return %c0_i32, %c0_i32_0 : i32, i32
  }
  func.func @transform_4(%arg0: i32) -> (i32, i32) {
    %c0_i32 = arith.constant 0 : i32
    %c0_i32_0 = arith.constant 0 : i32
    %c0_i32_1 = arith.constant 0 : i32
    return %c0_i32, %c0_i32_0 : i32, i32
  }
  func.func @transform_5(%arg0: i32) -> (i32, i32) {
    %c0_i32 = arith.constant 0 : i32
    %c0_i32_0 = arith.constant 0 : i32
    return %arg0, %c0_i32 : i32, i32
  }
}

module attributes {stable_mosaic.version = 11 : i64} {
  func.func @_ff_kernel(%arg0: i32, %arg1: memref<16x32xf32, #tpu.memory_space<vmem>>, %arg2: memref<32x128xbf16, #tpu.memory_space<vmem>>, %arg3: memref<1x128xf32, #tpu.memory_space<vmem>>, %arg4: memref<128x32xbf16, #tpu.memory_space<vmem>>, %arg5: memref<1x32xf32, #tpu.memory_space<vmem>>, %arg6: memref<16x32xf32, #tpu.memory_space<vmem>>) attributes {dimension_semantics = [#tpu.dimension_semantics<parallel>], iteration_bounds = array<i64: 1>, scalar_prefetch = 0 : i64, scratch_operands = 0 : i64, tpu.core_type = #tpu.core_type<tc>, window_params = [{transform_indices = @transform_0, window_bounds = array<i64: 16, 32>}, {pipeline_mode = #tpu.pipeline_mode<synchronous>, transform_indices = @transform_1, window_bounds = array<i64: 32, 128>}, {pipeline_mode = #tpu.pipeline_mode<synchronous>, transform_indices = @transform_2, window_bounds = array<i64: 1, 128>}, {pipeline_mode = #tpu.pipeline_mode<synchronous>, transform_indices = @transform_3, window_bounds = array<i64: 128, 32>}, {pipeline_mode = #tpu.pipeline_mode<synchronous>, transform_indices = @transform_4, window_bounds = array<i64: 1, 32>}, {transform_indices = @transform_5, window_bounds = array<i64: 16, 32>}]} {
    %c0 = arith.constant 0 : index
    %c0_0 = arith.constant 0 : index
    %0 = vector.load %arg1[%c0, %c0_0] : memref<16x32xf32, #tpu.memory_space<vmem>>, vector<16x32xf32>
    %1 = arith.truncf %0 : vector<16x32xf32> to vector<16x32xbf16>
    %c0_1 = arith.constant 0 : index
    %c0_2 = arith.constant 0 : index
    %2 = vector.load %arg2[%c0_1, %c0_2] : memref<32x128xbf16, #tpu.memory_space<vmem>>, vector<32x128xbf16>
    %cst = arith.constant dense<0.000000e+00> : vector<16x128xf32>
    %3 = tpu.matmul %1, %2, %cst {dimension_numbers = #tpu.dot_dimension_numbers<[1], [0], [0], [1], [0, 0, 1, 1], [], []>} : vector<16x32xbf16>, vector<32x128xbf16>, vector<16x128xf32> -> vector<16x128xf32>
    %c0_3 = arith.constant 0 : index
    %c0_4 = arith.constant 0 : index
    %4 = vector.load %arg3[%c0_3, %c0_4] : memref<1x128xf32, #tpu.memory_space<vmem>>, vector<1x128xf32>
    %5 = vector.broadcast %4 : vector<1x128xf32> to vector<16x128xf32>
    %6 = arith.addf %3, %5 : vector<16x128xf32>
    %cst_5 = arith.constant 5.000000e-01 : f32
    %7 = vector.broadcast %cst_5 : f32 to vector<16x128xf32>
    %8 = arith.mulf %7, %6 : vector<16x128xf32>
    %cst_6 = arith.constant 0.707106769 : f32
    %9 = vector.broadcast %cst_6 : f32 to vector<16x128xf32>
    %10 = arith.mulf %6, %9 : vector<16x128xf32>
    %11 = math.erf %10 : vector<16x128xf32>
    %cst_7 = arith.constant 1.000000e+00 : f32
    %12 = vector.broadcast %cst_7 : f32 to vector<16x128xf32>
    %13 = arith.addf %12, %11 : vector<16x128xf32>
    %14 = arith.mulf %8, %13 : vector<16x128xf32>
    %15 = arith.truncf %14 : vector<16x128xf32> to vector<16x128xbf16>
    %c0_8 = arith.constant 0 : index
    %c0_9 = arith.constant 0 : index
    %16 = vector.load %arg4[%c0_8, %c0_9] : memref<128x32xbf16, #tpu.memory_space<vmem>>, vector<128x32xbf16>
    %cst_10 = arith.constant dense<0.000000e+00> : vector<16x32xf32>
    %17 = tpu.matmul %15, %16, %cst_10 {dimension_numbers = #tpu.dot_dimension_numbers<[1], [0], [0], [1], [0, 0, 1, 1], [], []>} : vector<16x128xbf16>, vector<128x32xbf16>, vector<16x32xf32> -> vector<16x32xf32>
    %c0_11 = arith.constant 0 : index
    %c0_12 = arith.constant 0 : index
    %18 = vector.load %arg5[%c0_11, %c0_12] : memref<1x32xf32, #tpu.memory_space<vmem>>, vector<1x32xf32>
    %19 = vector.broadcast %18 : vector<1x32xf32> to vector<16x32xf32>
    %20 = arith.addf %17, %19 : vector<16x32xf32>
    %c0_13 = arith.constant 0 : index
    %c0_14 = arith.constant 0 : index
    %21 = vector.load %arg6[%c0_13, %c0_14] : memref<16x32xf32, #tpu.memory_space<vmem>>, vector<16x32xf32>
    tpu.vector_store %arg6[%c0_13, %c0_14], %20 {strides = array<i32>} : memref<16x32xf32, #tpu.memory_space<vmem>>, vector<16x32xf32>,
    return
  }
  func.func @transform_0(%arg0: i32) -> (i32, i32) {
    %c0_i32 = arith.constant 0 : i32
    %c0_i32_0 = arith.constant 0 : i32
    return %arg0, %c0_i32 : i32, i32
  }
  func.func @transform_1(%arg0: i32) -> (i32, i32) {
    %c0_i32 = arith.constant 0 : i32
    %c0_i32_0 = arith.constant 0 : i32
    %c0_i32_1 = arith.constant 0 : i32
    return %c0_i32, %c0_i32_0 : i32, i32
  }
  func.func @transform_2(%arg0: i32) -> (i32, i32) {
    %c0_i32 = arith.constant 0 : i32
    %c0_i32_0 = arith.constant 0 : i32
    %c0_i32_1 = arith.constant 0 : i32
    return %c0_i32, %c0_i32_0 : i32, i32
  }
  func.func @transform_3(%arg0: i32) -> (i32, i32) {
    %c0_i32 = arith.constant 0 : i32
    %c0_i32_0 = arith.constant 0 : i32
    %c0_i32_1 = arith.constant 0 : i32
    return %c0_i32, %c0_i32_0 : i32, i32
  }
  func.func @transform_4(%arg0: i32) -> (i32, i32) {
    %c0_i32 = arith.constant 0 : i32
    %c0_i32_0 = arith.constant 0 : i32
    %c0_i32_1 = arith.constant 0 : i32
    return %c0_i32, %c0_i32_0 : i32, i32
  }
  func.func @transform_5(%arg0: i32) -> (i32, i32) {
    %c0_i32 = arith.constant 0 : i32
    %c0_i32_0 = arith.constant 0 : i32
    return %arg0, %c0_i32 : i32, i32
  }
}

</mosaic_0001>

<llo_original>
// kernel: tpu_custom_call.1
$region0: #{tpu_custom_call.1}
  #allocation0 [shape = 'u32[]', space=smem, size = 0x4, offset = 0x4, fixed_abs, tag = 'smem constant byte address 0x4 - core index']
  #allocation1 [shape = 'u32[72,128]{1,0:T(1,128)}', space=vmem, size = 0x9000, scoped, tag = 'internal scratch']
  %s0 = inlined_call_operand.vmem [shape: f32[16,32], index: 0, kind: input, shape index: {}]
  %s1 = inlined_call_operand.vmem [shape: bf16[32,128], index: 1, kind: input, shape index: {}]
  %s2 = inlined_call_operand.vmem [shape: f32[1,128], index: 2, kind: input, shape index: {}]
  %s3 = inlined_call_operand.vmem [shape: bf16[128,32], index: 3, kind: input, shape index: {}]
  %s4 = inlined_call_operand.vmem [shape: f32[1,32], index: 4, kind: input, shape index: {}]
  %s5 = inlined_call_operand.hbm [shape: f32[16,32], index: 5, kind: output, shape index: {}]
  %s6 = sld [smem:[#allocation0]]
  $region30: #{tpu_custom_call.1} parent=0
    _
  %s8 = ssub.s32 1, %s6
  %s9 = scalar_select 0, %s8, %s6
  $region1: #{tpu_custom_call.1} parent=0
    #allocation2 [shape = 'u8[8192]{0}', space=vmem, size = 0x2000, scoped, tag = 'output window, operand 0, single buffered']
    #allocation3 [shape = 's32[1]{0}', space=sflag, size = 0x4, scoped, tag = 'scoped memory for tpu_custom_call.1']
    %10 = vsyncpa [#allocation3], 0
    // Predicated region
    $region2: #{tpu_custom_call.1} parent=1 // pred_check
      _
    $region3: #{tpu_custom_call.1} parent=1 // pred_check_branch
      %12 = sbr.rel (0) target = $region5
    $region4: #{tpu_custom_call.1} parent=1 // pred_region
      _
    $region5: #{tpu_custom_call.1} parent=1 // pred_fallthru
      _
    // Predicated region
    $region6: #{tpu_custom_call.1} parent=1 // pred_check
      _
    $region7: #{tpu_custom_call.1} parent=1 // pred_check_branch
      %14 = sbr.rel (0) target = $region9
    $region8: #{tpu_custom_call.1} parent=1 // pred_region
      _
    $region9: #{tpu_custom_call.1} parent=1 // pred_fallthru
      _
    // Predicated region
    $region10: #{tpu_custom_call.1} parent=1 // pred_check
      _
    $region11: #{tpu_custom_call.1} parent=1 // pred_check_branch
      %16 = sbr.rel (0) target = $region13
    $region12: #{tpu_custom_call.1} parent=1 // pred_region
      _
    $region13: #{tpu_custom_call.1} parent=1 // pred_fallthru
      _
    // Predicated region
    $region14: #{tpu_custom_call.1} parent=1 // pred_check
      _
    $region15: #{tpu_custom_call.1} parent=1 // pred_check_branch
      %18 = sbr.rel (0) target = $region17
    $region16: #{tpu_custom_call.1} parent=1 // pred_region
      _
    $region17: #{tpu_custom_call.1} parent=1 // pred_fallthru
      _
    // Predicated region
    $region18: #{tpu_custom_call.1} parent=1 // pred_check
      _
    $region19: #{tpu_custom_call.1} parent=1 // pred_check_branch
      %20 = sbr.rel (0) target = $region21
    $region20: #{tpu_custom_call.1} parent=1 // pred_region
      _
    $region21: #{tpu_custom_call.1} parent=1 // pred_fallthru
      _
    %v22 = vld [vmem:[%s0] sm:$0xff]
    %v23 = vld [vmem:[%s0 + $0x8] sm:$0xff]
    %v24 = vpack.c.bf16 %v23, %v22
    %v25 = vld [vmem:[%s1] sm:$0xf]
    %v26 = vld [vmem:[%s1 + $0x4] sm:$0xf]
    %v27 = vld [vmem:[%s1 + $0x8] sm:$0xf]
    %v28 = vld [vmem:[%s1 + $0xc] sm:$0xf]
    %v29 = vld [vmem:[%s2] sm:$0x1]
    %v31 = vperm.slane %v29, 0
    %v37 = vunpack.c.l.b16 %v25
    %v38 = vunpack.c.l.b16 %v26
    %v39 = vunpack.c.l.b16 %v27
    %v40 = vunpack.c.l.b16 %v28
    %v41 = vpack.c.b16 %v38, %v37
    %v42 = vpack.c.b16 %v40, %v39
    %vm45 = vcmask 261120
    %v47 = vsel %vm45, %v24, 0
    %49 = vmatpush.bf16.msra.mxu0 0
    %50 = vmatpush.bf16.msra.mxu0 0
    %51 = vmatpush.bf16.msra.mxu0 0
    %52 = vmatpush.bf16.msra.mxu0 0
    %53 = vmatpush.bf16.msra.mxu0 0
    %54 = vmatpush.bf16.msra.mxu0 0
    %55 = vmatpush.bf16.msra.mxu0 %v42
    %56 = vmatpush.bf16.msra.mxu0 %v41
    %57 = vmatmul.bf16.gmra.mxu0 %v47
    %v58 = vpop.f32.mrf.mxu0
    %v59 = vadd.f32 %v31, %v58
    %v60 = vpop.f32.mrf.mxu0
    %v61 = vadd.f32 %v31, %v60
    %62 = vdwg.mxu0
    %v63 = vmul.f32 %v59, 0.5
    %v64 = vmul.f32 %v61, 0.5
    %v65 = vmul.f32 %v59, 0.70710677
    %v66 = vmul.f32 %v61, 0.70710677
    %v67 = vmul.f32 %v65, %v65
    %v68 = vmin.f32 16.0, %v67
    %v69 = vmul.f32 %v68, 2.1237322e-06
    %v70 = vadd.f32 %v69, 0.00028619796
    %v71 = vmul.f32 %v68, %v70
    %v72 = vadd.f32 %v71, 0.0036580483
    %v73 = vmul.f32 %v68, %v72
    %v74 = vadd.f32 %v73, 0.05243302
    %v75 = vmul.f32 %v68, %v74
    %v76 = vadd.f32 %v75, 0.18741608
    %v77 = vmul.f32 %v68, %v76
    %v78 = vadd.f32 %v77, 1.1283791
    %v79 = vmul.f32 %v65, %v78
    %v80 = vmul.f32 %v68, 3.8918573e-05
    %v81 = vadd.f32 %v80, 0.001143296
    %v82 = vmul.f32 %v68, %v81
    %v83 = vadd.f32 %v82, 0.014752088
    %v84 = vmul.f32 %v68, %v83
    %v85 = vadd.f32 %v84, 0.112945676
    %v86 = vmul.f32 %v68, %v85
    %v87 = vadd.f32 %v86, 0.4994258
    %v88 = vmul.f32 %v68, %v87
    %v89 = vadd.f32 %v88, 1.0
    %v90 = vrcp.pop %v89
    %v91 = vmul.f32 %v89, %v90
    %v92 = vsub.f32 1.0, %v91
    %v93 = vmul.f32 %v90, %v92
    %v94 = vadd.f32 %v90, %v93
    %vm95 = vweird.f32 %v89
    %vm96 = vweird.f32 %v90
    %vm97 = vmor %vm95, %vm96
    %v98 = vsel %vm97, %v90, %v94
    %v99 = vand.u32 2147483647, %v89
    %vm100 = vcmp.eq.f32.partialorder %v99, 8.507059e+37
    %v101 = vand.u32 %v89, 2147483648
    %v102 = vor.u32 1.1754944e-38, %v101
    %v103 = vsel %vm100, %v102, %v98
    %v104 = vmul.f32 %v79, %v103
    %v105 = vmin.f32 %v104, 1.0
    %v106 = vmax.f32 %v105, -1.0
    %v107 = vmul.f32 %v66, %v66
    %v108 = vmin.f32 16.0, %v107
    %v109 = vmul.f32 %v108, 2.1237322e-06
    %v110 = vadd.f32 %v109, 0.00028619796
    %v111 = vmul.f32 %v108, %v110
    %v112 = vadd.f32 %v111, 0.0036580483
    %v113 = vmul.f32 %v108, %v112
    %v114 = vadd.f32 %v113, 0.05243302
    %v115 = vmul.f32 %v108, %v114
    %v116 = vadd.f32 %v115, 0.18741608
    %v117 = vmul.f32 %v108, %v116
    %v118 = vadd.f32 %v117, 1.1283791
    %v119 = vmul.f32 %v66, %v118
    %v120 = vmul.f32 %v108, 3.8918573e-05
    %v121 = vadd.f32 %v120, 0.001143296
    %v122 = vmul.f32 %v108, %v121
    %v123 = vadd.f32 %v122, 0.014752088
    %v124 = vmul.f32 %v108, %v123
    %v125 = vadd.f32 %v124, 0.112945676
    %v126 = vmul.f32 %v108, %v125
    %v127 = vadd.f32 %v126, 0.4994258
    %v128 = vmul.f32 %v108, %v127
    %v129 = vadd.f32 %v128, 1.0
    %v130 = vrcp.pop %v129
    %v131 = vmul.f32 %v129, %v130
    %v132 = vsub.f32 1.0, %v131
    %v133 = vmul.f32 %v130, %v132
    %v134 = vadd.f32 %v130, %v133
    %vm135 = vweird.f32 %v129
    %vm136 = vweird.f32 %v130
    %vm137 = vmor %vm135, %vm136
    %v138 = vsel %vm137, %v130, %v134
    %v139 = vand.u32 2147483647, %v129
    %vm140 = vcmp.eq.f32.partialorder %v139, 8.507059e+37
    %v141 = vand.u32 %v129, 2147483648
    %v142 = vor.u32 1.1754944e-38, %v141
    %v143 = vsel %vm140, %v142, %v138
    %v144 = vmul.f32 %v119, %v143
    %v145 = vmin.f32 %v144, 1.0
    %v146 = vmax.f32 %v145, -1.0
    %v147 = vadd.f32 %v106, 1.0
    %v148 = vadd.f32 %v146, 1.0
    %v149 = vmul.f32 %v63, %v147
    %v150 = vmul.f32 %v64, %v148
    %v151 = vpack.c.bf16 %v150, %v149
    %v152 = vld [vmem:[%s3] sm:$0xf]
    %v153 = vld [vmem:[%s3 + $0x4] sm:$0xf]
    %v154 = vld [vmem:[%s3 + $0x8] sm:$0xf]
    %v155 = vld [vmem:[%s3 + $0xc] sm:$0xf]
    %v156 = vld [vmem:[%s3 + $0x10] sm:$0xf]
    %v157 = vld [vmem:[%s3 + $0x14] sm:$0xf]
    %v158 = vld [vmem:[%s3 + $0x18] sm:$0xf]
    %v159 = vld [vmem:[%s3 + $0x1c] sm:$0xf]
    %v160 = vld [vmem:[%s3 + $0x20] sm:$0xf]
    %v161 = vld [vmem:[%s3 + $0x24] sm:$0xf]
    %v162 = vld [vmem:[%s3 + $0x28] sm:$0xf]
    %v163 = vld [vmem:[%s3 + $0x2c] sm:$0xf]
    %v164 = vld [vmem:[%s3 + $0x30] sm:$0xf]
    %v165 = vld [vmem:[%s3 + $0x34] sm:$0xf]
    %v166 = vld [vmem:[%s3 + $0x38] sm:$0xf]
    %v167 = vld [vmem:[%s3 + $0x3c] sm:$0xf]
    %v168 = vld [vmem:[%s4] sm:$0x1]
    %v170 = vperm.slane %v168, 0
    %v188 = vunpack.c.l.b16 %v152
    %v189 = vunpack.c.l.b16 %v153
    %v190 = vunpack.c.l.b16 %v154
    %v191 = vunpack.c.l.b16 %v155
    %v192 = vunpack.c.l.b16 %v156
    %v193 = vunpack.c.l.b16 %v157
    %v194 = vunpack.c.l.b16 %v158
    %v195 = vunpack.c.l.b16 %v159
    %v196 = vunpack.c.l.b16 %v160
    %v197 = vunpack.c.l.b16 %v161
    %v198 = vunpack.c.l.b16 %v162
    %v199 = vunpack.c.l.b16 %v163
    %v200 = vunpack.c.l.b16 %v164
    %v201 = vunpack.c.l.b16 %v165
    %v202 = vunpack.c.l.b16 %v166
    %v203 = vunpack.c.l.b16 %v167
    %v204 = vpack.c.b16 %v189, %v188
    %v205 = vpack.c.b16 %v191, %v190
    %v206 = vpack.c.b16 %v193, %v192
    %v207 = vpack.c.b16 %v195, %v194
    %v208 = vpack.c.b16 %v197, %v196
    %v209 = vpack.c.b16 %v199, %v198
    %v210 = vpack.c.b16 %v201, %v200
    %v211 = vpack.c.b16 %v203, %v202
    %220 = vmatpush.bf16.msra.mxu0 %v211
    %221 = vmatpush.bf16.msra.mxu0 %v210
    %222 = vmatpush.bf16.msra.mxu0 %v209
    %223 = vmatpush.bf16.msra.mxu0 %v208
    %224 = vmatpush.bf16.msra.mxu0 %v207
    %225 = vmatpush.bf16.msra.mxu0 %v206
    %226 = vmatpush.bf16.msra.mxu0 %v205
    %227 = vmatpush.bf16.msra.mxu0 %v204
    %228 = vmatmul.bf16.gmra.mxu0 %v151
    %v229 = vpop.f32.mrf.mxu0
    %v230 = vadd.f32 %v170, %v229
    %v231 = vpop.f32.mrf.mxu0
    %v232 = vadd.f32 %v170, %v231
    %233 = vdwg.mxu0
    %234 = vst.msk [vmem:[#allocation2] sm:$0xff] %vm45, %v230
    %235 = vst.msk [vmem:[#allocation2 + $0x8] sm:$0xff] %vm45, %v232
    // Predicated region
    $region22: #{tpu_custom_call.1} parent=1 // pred_check
      _
    $region23: #{tpu_custom_call.1} parent=1 // pred_check_branch
      %237 = sbr.rel (0) target = $region25
    $region24: #{tpu_custom_call.1} parent=1 // pred_region
      %239 = vsyncadd [#allocation3], 0
      %s240 = sshll.u32 [#allocation2], 4
      %s241 = int_to_ptr.vmem [resolvable:$true] %s240
      %s242 = sshll.u32 %s5, 4
      %s243 = int_to_ptr.hbm [resolvable:$true] %s242
      %248 = dma.vmem_to_hbm [thread:$0]  %s241, 256, %s243, [#allocation3], 128, 128, 8
    $region25: #{tpu_custom_call.1} parent=1 // pred_fallthru
      _
    // Predicated region
    $region26: #{tpu_custom_call.1} parent=1 // pred_check
      _
    $region27: #{tpu_custom_call.1} parent=1 // pred_check_branch
      %250 = sbr.rel (0) target = $region29
    $region28: #{tpu_custom_call.1} parent=1 // pred_region
      %252 = dma.done [#allocation3], 256
    $region29: #{tpu_custom_call.1} parent=1 // pred_fallthru
      _
    %253 = vsyncpa [#allocation3], 1

// kernel: tpu_custom_call.1
$region0: #{tpu_custom_call.1}
  #allocation0 [shape = 'u32[]', space=smem, size = 0x4, offset = 0x4, fixed_abs, tag = 'smem constant byte address 0x4 - core index']
  #allocation1 [shape = 'u32[72,128]{1,0:T(1,128)}', space=vmem, size = 0x9000, scoped, tag = 'internal scratch']
  %s0 = inlined_call_operand.vmem [shape: f32[16,32], index: 0, kind: input, shape index: {}]
  %s1 = inlined_call_operand.vmem [shape: bf16[32,128], index: 1, kind: input, shape index: {}]
  %s2 = inlined_call_operand.vmem [shape: f32[1,128], index: 2, kind: input, shape index: {}]
  %s3 = inlined_call_operand.vmem [shape: bf16[128,32], index: 3, kind: input, shape index: {}]
  %s4 = inlined_call_operand.vmem [shape: f32[1,32], index: 4, kind: input, shape index: {}]
  %s5 = inlined_call_operand.hbm [shape: f32[16,32], index: 5, kind: output, shape index: {}]
  %s6 = sld [smem:[#allocation0]]
  $region30: #{tpu_custom_call.1} parent=0
    _
  %s8 = ssub.s32 1, %s6
  %s9 = scalar_select 0, %s8, %s6
  $region1: #{tpu_custom_call.1} parent=0
    #allocation2 [shape = 'u8[8192]{0}', space=vmem, size = 0x2000, scoped, tag = 'output window, operand 0, single buffered']
    #allocation3 [shape = 's32[1]{0}', space=sflag, size = 0x4, scoped, tag = 'scoped memory for tpu_custom_call.1']
    %10 = vsyncpa [#allocation3], 0
    // Predicated region
    $region2: #{tpu_custom_call.1} parent=1 // pred_check
      _
    $region3: #{tpu_custom_call.1} parent=1 // pred_check_branch
      %12 = sbr.rel (0) target = $region5
    $region4: #{tpu_custom_call.1} parent=1 // pred_region
      _
    $region5: #{tpu_custom_call.1} parent=1 // pred_fallthru
      _
    // Predicated region
    $region6: #{tpu_custom_call.1} parent=1 // pred_check
      _
    $region7: #{tpu_custom_call.1} parent=1 // pred_check_branch
      %14 = sbr.rel (0) target = $region9
    $region8: #{tpu_custom_call.1} parent=1 // pred_region
      _
    $region9: #{tpu_custom_call.1} parent=1 // pred_fallthru
      _
    // Predicated region
    $region10: #{tpu_custom_call.1} parent=1 // pred_check
      _
    $region11: #{tpu_custom_call.1} parent=1 // pred_check_branch
      %16 = sbr.rel (0) target = $region13
    $region12: #{tpu_custom_call.1} parent=1 // pred_region
      _
    $region13: #{tpu_custom_call.1} parent=1 // pred_fallthru
      _
    // Predicated region
    $region14: #{tpu_custom_call.1} parent=1 // pred_check
      _
    $region15: #{tpu_custom_call.1} parent=1 // pred_check_branch
      %18 = sbr.rel (0) target = $region17
    $region16: #{tpu_custom_call.1} parent=1 // pred_region
      _
    $region17: #{tpu_custom_call.1} parent=1 // pred_fallthru
      _
    // Predicated region
    $region18: #{tpu_custom_call.1} parent=1 // pred_check
      _
    $region19: #{tpu_custom_call.1} parent=1 // pred_check_branch
      %20 = sbr.rel (0) target = $region21
    $region20: #{tpu_custom_call.1} parent=1 // pred_region
      _
    $region21: #{tpu_custom_call.1} parent=1 // pred_fallthru
      _
    %v22 = vld [vmem:[%s0] sm:$0xff]
    %v23 = vld [vmem:[%s0 + $0x8] sm:$0xff]
    %v24 = vpack.c.bf16 %v23, %v22
    %v25 = vld [vmem:[%s1] sm:$0xf]
    %v26 = vld [vmem:[%s1 + $0x4] sm:$0xf]
    %v27 = vld [vmem:[%s1 + $0x8] sm:$0xf]
    %v28 = vld [vmem:[%s1 + $0xc] sm:$0xf]
    %v29 = vld [vmem:[%s2] sm:$0x1]
    %v31 = vperm.slane %v29, 0
    %v37 = vunpack.c.l.b16 %v25
    %v38 = vunpack.c.l.b16 %v26
    %v39 = vunpack.c.l.b16 %v27
    %v40 = vunpack.c.l.b16 %v28
    %v41 = vpack.c.b16 %v38, %v37
    %v42 = vpack.c.b16 %v40, %v39
    %vm45 = vcmask 261120
    %v47 = vsel %vm45, %v24, 0
    %49 = vmatpush.bf16.msra.mxu0 0
    %50 = vmatpush.bf16.msra.mxu0 0
    %51 = vmatpush.bf16.msra.mxu0 0
    %52 = vmatpush.bf16.msra.mxu0 0
    %53 = vmatpush.bf16.msra.mxu0 0
    %54 = vmatpush.bf16.msra.mxu0 0
    %55 = vmatpush.bf16.msra.mxu0 %v42
    %56 = vmatpush.bf16.msra.mxu0 %v41
    %57 = vmatmul.bf16.gmra.mxu0 %v47
    %v58 = vpop.f32.mrf.mxu0
    %v59 = vadd.f32 %v31, %v58
    %v60 = vpop.f32.mrf.mxu0
    %v61 = vadd.f32 %v31, %v60
    %62 = vdwg.mxu0
    %v63 = vmul.f32 %v59, 0.5
    %v64 = vmul.f32 %v61, 0.5
    %v65 = vmul.f32 %v59, 0.70710677
    %v66 = vmul.f32 %v61, 0.70710677
    %v67 = vmul.f32 %v65, %v65
    %v68 = vmin.f32 16.0, %v67
    %v69 = vmul.f32 %v68, 2.1237322e-06
    %v70 = vadd.f32 %v69, 0.00028619796
    %v71 = vmul.f32 %v68, %v70
    %v72 = vadd.f32 %v71, 0.0036580483
    %v73 = vmul.f32 %v68, %v72
    %v74 = vadd.f32 %v73, 0.05243302
    %v75 = vmul.f32 %v68, %v74
    %v76 = vadd.f32 %v75, 0.18741608
    %v77 = vmul.f32 %v68, %v76
    %v78 = vadd.f32 %v77, 1.1283791
    %v79 = vmul.f32 %v65, %v78
    %v80 = vmul.f32 %v68, 3.8918573e-05
    %v81 = vadd.f32 %v80, 0.001143296
    %v82 = vmul.f32 %v68, %v81
    %v83 = vadd.f32 %v82, 0.014752088
    %v84 = vmul.f32 %v68, %v83
    %v85 = vadd.f32 %v84, 0.112945676
    %v86 = vmul.f32 %v68, %v85
    %v87 = vadd.f32 %v86, 0.4994258
    %v88 = vmul.f32 %v68, %v87
    %v89 = vadd.f32 %v88, 1.0
    %v90 = vrcp.pop %v89
    %v91 = vmul.f32 %v89, %v90
    %v92 = vsub.f32 1.0, %v91
    %v93 = vmul.f32 %v90, %v92
    %v94 = vadd.f32 %v90, %v93
    %vm95 = vweird.f32 %v89
    %vm96 = vweird.f32 %v90
    %vm97 = vmor %vm95, %vm96
    %v98 = vsel %vm97, %v90, %v94
    %v99 = vand.u32 2147483647, %v89
    %vm100 = vcmp.eq.f32.partialorder %v99, 8.507059e+37
    %v101 = vand.u32 %v89, 2147483648
    %v102 = vor.u32 1.1754944e-38, %v101
    %v103 = vsel %vm100, %v102, %v98
    %v104 = vmul.f32 %v79, %v103
    %v105 = vmin.f32 %v104, 1.0
    %v106 = vmax.f32 %v105, -1.0
    %v107 = vmul.f32 %v66, %v66
    %v108 = vmin.f32 16.0, %v107
    %v109 = vmul.f32 %v108, 2.1237322e-06
    %v110 = vadd.f32 %v109, 0.00028619796
    %v111 = vmul.f32 %v108, %v110
    %v112 = vadd.f32 %v111, 0.0036580483
    %v113 = vmul.f32 %v108, %v112
    %v114 = vadd.f32 %v113, 0.05243302
    %v115 = vmul.f32 %v108, %v114
    %v116 = vadd.f32 %v115, 0.18741608
    %v117 = vmul.f32 %v108, %v116
    %v118 = vadd.f32 %v117, 1.1283791
    %v119 = vmul.f32 %v66, %v118
    %v120 = vmul.f32 %v108, 3.8918573e-05
    %v121 = vadd.f32 %v120, 0.001143296
    %v122 = vmul.f32 %v108, %v121
    %v123 = vadd.f32 %v122, 0.014752088
    %v124 = vmul.f32 %v108, %v123
    %v125 = vadd.f32 %v124, 0.112945676
    %v126 = vmul.f32 %v108, %v125
    %v127 = vadd.f32 %v126, 0.4994258
    %v128 = vmul.f32 %v108, %v127
    %v129 = vadd.f32 %v128, 1.0
    %v130 = vrcp.pop %v129
    %v131 = vmul.f32 %v129, %v130
    %v132 = vsub.f32 1.0, %v131
    %v133 = vmul.f32 %v130, %v132
    %v134 = vadd.f32 %v130, %v133
    %vm135 = vweird.f32 %v129
    %vm136 = vweird.f32 %v130
    %vm137 = vmor %vm135, %vm136
    %v138 = vsel %vm137, %v130, %v134
    %v139 = vand.u32 2147483647, %v129
    %vm140 = vcmp.eq.f32.partialorder %v139, 8.507059e+37
    %v141 = vand.u32 %v129, 2147483648
    %v142 = vor.u32 1.1754944e-38, %v141
    %v143 = vsel %vm140, %v142, %v138
    %v144 = vmul.f32 %v119, %v143
    %v145 = vmin.f32 %v144, 1.0
    %v146 = vmax.f32 %v145, -1.0
    %v147 = vadd.f32 %v106, 1.0
    %v148 = vadd.f32 %v146, 1.0
    %v149 = vmul.f32 %v63, %v147
    %v150 = vmul.f32 %v64, %v148
    %v151 = vpack.c.bf16 %v150, %v149
    %v152 = vld [vmem:[%s3] sm:$0xf]
    %v153 = vld [vmem:[%s3 + $0x4] sm:$0xf]
    %v154 = vld [vmem:[%s3 + $0x8] sm:$0xf]
    %v155 = vld [vmem:[%s3 + $0xc] sm:$0xf]
    %v156 = vld [vmem:[%s3 + $0x10] sm:$0xf]
    %v157 = vld [vmem:[%s3 + $0x14] sm:$0xf]
    %v158 = vld [vmem:[%s3 + $0x18] sm:$0xf]
    %v159 = vld [vmem:[%s3 + $0x1c] sm:$0xf]
    %v160 = vld [vmem:[%s3 + $0x20] sm:$0xf]
    %v161 = vld [vmem:[%s3 + $0x24] sm:$0xf]
    %v162 = vld [vmem:[%s3 + $0x28] sm:$0xf]
    %v163 = vld [vmem:[%s3 + $0x2c] sm:$0xf]
    %v164 = vld [vmem:[%s3 + $0x30] sm:$0xf]
    %v165 = vld [vmem:[%s3 + $0x34] sm:$0xf]
    %v166 = vld [vmem:[%s3 + $0x38] sm:$0xf]
    %v167 = vld [vmem:[%s3 + $0x3c] sm:$0xf]
    %v168 = vld [vmem:[%s4] sm:$0x1]
    %v170 = vperm.slane %v168, 0
    %v188 = vunpack.c.l.b16 %v152
    %v189 = vunpack.c.l.b16 %v153
    %v190 = vunpack.c.l.b16 %v154
    %v191 = vunpack.c.l.b16 %v155
    %v192 = vunpack.c.l.b16 %v156
    %v193 = vunpack.c.l.b16 %v157
    %v194 = vunpack.c.l.b16 %v158
    %v195 = vunpack.c.l.b16 %v159
    %v196 = vunpack.c.l.b16 %v160
    %v197 = vunpack.c.l.b16 %v161
    %v198 = vunpack.c.l.b16 %v162
    %v199 = vunpack.c.l.b16 %v163
    %v200 = vunpack.c.l.b16 %v164
    %v201 = vunpack.c.l.b16 %v165
    %v202 = vunpack.c.l.b16 %v166
    %v203 = vunpack.c.l.b16 %v167
    %v204 = vpack.c.b16 %v189, %v188
    %v205 = vpack.c.b16 %v191, %v190
    %v206 = vpack.c.b16 %v193, %v192
    %v207 = vpack.c.b16 %v195, %v194
    %v208 = vpack.c.b16 %v197, %v196
    %v209 = vpack.c.b16 %v199, %v198
    %v210 = vpack.c.b16 %v201, %v200
    %v211 = vpack.c.b16 %v203, %v202
    %220 = vmatpush.bf16.msra.mxu0 %v211
    %221 = vmatpush.bf16.msra.mxu0 %v210
    %222 = vmatpush.bf16.msra.mxu0 %v209
    %223 = vmatpush.bf16.msra.mxu0 %v208
    %224 = vmatpush.bf16.msra.mxu0 %v207
    %225 = vmatpush.bf16.msra.mxu0 %v206
    %226 = vmatpush.bf16.msra.mxu0 %v205
    %227 = vmatpush.bf16.msra.mxu0 %v204
    %228 = vmatmul.bf16.gmra.mxu0 %v151
    %v229 = vpop.f32.mrf.mxu0
    %v230 = vadd.f32 %v170, %v229
    %v231 = vpop.f32.mrf.mxu0
    %v232 = vadd.f32 %v170, %v231
    %233 = vdwg.mxu0
    %234 = vst.msk [vmem:[#allocation2] sm:$0xff] %vm45, %v230
    %235 = vst.msk [vmem:[#allocation2 + $0x8] sm:$0xff] %vm45, %v232
    // Predicated region
    $region22: #{tpu_custom_call.1} parent=1 // pred_check
      _
    $region23: #{tpu_custom_call.1} parent=1 // pred_check_branch
      %237 = sbr.rel (0) target = $region25
    $region24: #{tpu_custom_call.1} parent=1 // pred_region
      %239 = vsyncadd [#allocation3], 0
      %s240 = sshll.u32 [#allocation2], 4
      %s241 = int_to_ptr.vmem [resolvable:$true] %s240
      %s242 = sshll.u32 %s5, 4
      %s243 = int_to_ptr.hbm [resolvable:$true] %s242
      %248 = dma.vmem_to_hbm [thread:$0]  %s241, 256, %s243, [#allocation3], 128, 128, 8
    $region25: #{tpu_custom_call.1} parent=1 // pred_fallthru
      _
    // Predicated region
    $region26: #{tpu_custom_call.1} parent=1 // pred_check
      _
    $region27: #{tpu_custom_call.1} parent=1 // pred_check_branch
      %250 = sbr.rel (0) target = $region29
    $region28: #{tpu_custom_call.1} parent=1 // pred_region
      %252 = dma.done [#allocation3], 256
    $region29: #{tpu_custom_call.1} parent=1 // pred_fallthru
      _
    %253 = vsyncpa [#allocation3], 1

</llo_original>
